<compile_context>
chip_gen: v6e
topology: v6e:2x2x1
jax: 0.10.0
libtpu: 0.0.40
codegen_flags: <defaults>
</compile_context>

<pallas_src>
import jax
import jax.numpy as jnp
from jax.experimental import pallas as pl
from jax.experimental.pallas import tpu as pltpu


def _round_up(x: int, m: int) -> int:
    return ((x + m - 1) // m) * m


def _pick_batch_tile(B: int, batch_tile: int) -> int:
    """Lane-dense (multiple-of-128) batch tile; keep >=2 grid steps for v7x."""
    bt = _round_up(min(batch_tile, max(B, 1)), 128)
    # v7x has 2 TensorCores per chip: a 1-step grid leaves one TC idle, so
    # split the batch into (at least) 2 parallel steps when it is big enough.
    if B > 128 and pl.cdiv(B, bt) < 2:
        bt = _round_up(pl.cdiv(B, 2), 128)
    return bt


def _autoencoder_kernel(
    x_ref,                                              # (bt, input_dim)  f32, batch-major
    w1_ref, b1_ref, w2_ref, b2_ref, w3_ref, b3_ref,     # encoder (VMEM-resident)
    w4_ref, b4_ref, w5_ref, b5_ref, w6_ref, b6_ref,     # decoder (VMEM-resident)
    recon_ref, latent_ref,                              # (bt, input_dim), (bt, latent_dim)
):
    # Go feature-major inside the kernel so the batch sits on the 128-lane
    # axis (lane-dense MXU results).  The transpose is an XLU op (free-ish
    # next to the MXU) and replaces the old wrapper-side HBM transpose.
    xT = x_ref[...].astype(jnp.float32).T               # (input_dim, bt)

    def dense(w_ref, b_ref, a):
        # bf16 x bf16 -> f32 accumulate on the MXU: (out,in) @ (in,bt) -> (out,bt)
        # bias (out, 1) broadcasts over the batch lanes.
        return (
            jnp.dot(w_ref[...], a.astype(jnp.bfloat16),
                    preferred_element_type=jnp.float32)
            + b_ref[...]
        )

    # ---- encoder ----
    h = jnp.maximum(dense(w1_ref, b1_ref, xT), 0.0)
    h = jnp.maximum(dense(w2_ref, b2_ref, h), 0.0)
    z = dense(w3_ref, b3_ref, h)                         # (latent_dim, bt) f32
    latent_ref[...] = z.T.astype(latent_ref.dtype)       # store batch-major

    # ---- decoder ----
    h = jnp.maximum(dense(w4_ref, b4_ref, z), 0.0)
    h = jnp.maximum(dense(w5_ref, b5_ref, h), 0.0)
    r = dense(w6_ref, b6_ref, h)                         # (input_dim, bt) f32
    recon_ref[...] = r.T.astype(recon_ref.dtype)         # store batch-major


def init_autoencoder_params(key, input_dim: int, latent_dim: int = 8):
    """Deterministic synthetic parameters (same shapes/init as nn.Linear).

    Weights are (out_features, in_features); biases are (out_features, 1)."""
    dims = [
        (input_dim, 64), (64, 32), (32, latent_dim),     # encoder
        (latent_dim, 32), (32, 64), (64, input_dim),     # decoder
    ]
    params = []
    for (fan_in, fan_out) in dims:
        key, kw, kb = jax.random.split(key, 3)
        bound = 1.0 / (fan_in ** 0.5)
        w = jax.random.uniform(kw, (fan_out, fan_in), jnp.float32, -bound, bound)
        b = jax.random.uniform(kb, (fan_out, 1), jnp.float32, -bound, bound)
        params.append((w, b))
    return params


def autoencoder_forward(x, params, *, batch_tile: int = 1024):
    """Fused Pallas forward pass. x: (B, input_dim) float32.

    Returns (reconstructed, latent) matching the PyTorch module semantics.
    NOTE: on v5e keep batch_tile <= ~1024 (single vector-store slot);
    on v6e/v7x larger tiles (2048-4096) are also worth sweeping."""
    B, input_dim = x.shape
    latent_dim = params[2][0].shape[0]                   # w3: (latent_dim, 32)

    bt = _pick_batch_tile(B, batch_tile)
    grid = (pl.cdiv(B, bt),)                             # partial last block is masked

    # Weights in bf16 (halves weight bytes, ~3x fewer MXU passes); biases f32.
    flat_params = []
    for (w, b) in params:
        flat_params += [w.astype(jnp.bfloat16), b.astype(jnp.float32)]

    # Tiny weights/biases live in VMEM for the whole kernel (no pipelining).
    vmem_full = pl.BlockSpec(memory_space=pltpu.MemorySpace.VMEM)

    in_specs = [pl.BlockSpec((bt, input_dim), lambda i: (i, 0))] + [vmem_full] * 12
    out_specs = [
        pl.BlockSpec((bt, input_dim), lambda i: (i, 0)),
        pl.BlockSpec((bt, latent_dim), lambda i: (i, 0)),
    ]
    out_shape = (
        jax.ShapeDtypeStruct((B, input_dim), jnp.float32),
        jax.ShapeDtypeStruct((B, latent_dim), jnp.float32),
    )

    recon, latent = pl.pallas_call(
        _autoencoder_kernel,
        out_shape=out_shape,
        grid=grid,
        in_specs=in_specs,
        out_specs=out_specs,
        compiler_params=pltpu.CompilerParams(
            dimension_semantics=("parallel",),
            # Explicit limit: safe on v5e (16 MiB default) and within v7x's
            # 64 MiB physical VMEM; leaves room for larger batch tiles.
            vmem_limit_bytes=32 * 1024 * 1024,
        ),
    )(x, *flat_params)

    return recon, latent


def autoencoder_ref(x, params):
    """Pure-JAX f32 reference for correctness checking."""
    (w1, b1), (w2, b2), (w3, b3), (w4, b4), (w5, b5), (w6, b6) = params

    def lin(w, b, a):
        return a @ w.T + b[:, 0]

    h = jnp.maximum(lin(w1, b1, x), 0.0)
    h = jnp.maximum(lin(w2, b2, h), 0.0)
    z = lin(w3, b3, h)
    h = jnp.maximum(lin(w4, b4, z), 0.0)
    h = jnp.maximum(lin(w5, b5, h), 0.0)
    r = lin(w6, b6, h)
    return r, z


if __name__ == "__main__":
    key = jax.random.PRNGKey(0)
    key, kx, kp = jax.random.split(key, 3)

    B = 256          # batch: picks bt=128 -> 2 parallel grid steps (v7x-friendly)
    INPUT_DIM = 16   # feature dimension fed to the autoencoder
    LATENT_DIM = 8

    x = jax.random.normal(kx, (B, INPUT_DIM), jnp.float32)
    params = init_autoencoder_params(kp, INPUT_DIM, LATENT_DIM)

    recon, latent = autoencoder_forward(x, params)
    recon = jax.block_until_ready(recon)
    latent = jax.block_until_ready(latent)

    recon_ref_v, latent_ref_v = autoencoder_ref(x, params)
    assert recon.shape == (B, INPUT_DIM)
    assert latent.shape == (B, LATENT_DIM)
    # bf16 matmul inputs (f32 accumulate) -> loosened tolerance vs f32 reference.
    assert jnp.allclose(latent, latent_ref_v, atol=3e-2, rtol=3e-2), (
        float(jnp.max(jnp.abs(latent - latent_ref_v))))
    assert jnp.allclose(recon, recon_ref_v, atol=3e-2, rtol=3e-2), (
        float(jnp.max(jnp.abs(recon - recon_ref_v))))

    print("KERNEL_OK")
</pallas_src>

<mosaic_0001>
module attributes {stable_mosaic.version = 11 : i64} {
  func.func @_autoencoder_kernel(%arg0: i32, %arg1: memref<128x16xf32, #tpu.memory_space<vmem>>, %arg2: memref<64x16xbf16, #tpu.memory_space<vmem>>, %arg3: memref<64x1xf32, #tpu.memory_space<vmem>>, %arg4: memref<32x64xbf16, #tpu.memory_space<vmem>>, %arg5: memref<32x1xf32, #tpu.memory_space<vmem>>, %arg6: memref<8x32xbf16, #tpu.memory_space<vmem>>, %arg7: memref<8x1xf32, #tpu.memory_space<vmem>>, %arg8: memref<32x8xbf16, #tpu.memory_space<vmem>>, %arg9: memref<32x1xf32, #tpu.memory_space<vmem>>, %arg10: memref<64x32xbf16, #tpu.memory_space<vmem>>, %arg11: memref<64x1xf32, #tpu.memory_space<vmem>>, %arg12: memref<16x64xbf16, #tpu.memory_space<vmem>>, %arg13: memref<16x1xf32, #tpu.memory_space<vmem>>, %arg14: memref<128x16xf32, #tpu.memory_space<vmem>>, %arg15: memref<128x8xf32, #tpu.memory_space<vmem>>) attributes {dimension_semantics = [#tpu.dimension_semantics<parallel>], iteration_bounds = array<i64: 2>, scalar_prefetch = 0 : i64, scratch_operands = 0 : i64, tpu.core_type = #tpu.core_type<tc>, window_params = [{transform_indices = @transform_0, window_bounds = array<i64: 128, 16>}, {pipeline_mode = #tpu.pipeline_mode<synchronous>, transform_indices = @transform_1, window_bounds = array<i64: 64, 16>}, {pipeline_mode = #tpu.pipeline_mode<synchronous>, transform_indices = @transform_2, window_bounds = array<i64: 64, 1>}, {pipeline_mode = #tpu.pipeline_mode<synchronous>, transform_indices = @transform_3, window_bounds = array<i64: 32, 64>}, {pipeline_mode = #tpu.pipeline_mode<synchronous>, transform_indices = @transform_4, window_bounds = array<i64: 32, 1>}, {pipeline_mode = #tpu.pipeline_mode<synchronous>, transform_indices = @transform_5, window_bounds = array<i64: 8, 32>}, {pipeline_mode = #tpu.pipeline_mode<synchronous>, transform_indices = @transform_6, window_bounds = array<i64: 8, 1>}, {pipeline_mode = #tpu.pipeline_mode<synchronous>, transform_indices = @transform_7, window_bounds = array<i64: 32, 8>}, {pipeline_mode = #tpu.pipeline_mode<synchronous>, transform_indices = @transform_8, window_bounds = array<i64: 32, 1>}, {pipeline_mode = #tpu.pipeline_mode<synchronous>, transform_indices = @transform_9, window_bounds = array<i64: 64, 32>}, {pipeline_mode = #tpu.pipeline_mode<synchronous>, transform_indices = @transform_10, window_bounds = array<i64: 64, 1>}, {pipeline_mode = #tpu.pipeline_mode<synchronous>, transform_indices = @transform_11, window_bounds = array<i64: 16, 64>}, {pipeline_mode = #tpu.pipeline_mode<synchronous>, transform_indices = @transform_12, window_bounds = array<i64: 16, 1>}, {transform_indices = @transform_13, window_bounds = array<i64: 128, 16>}, {transform_indices = @transform_14, window_bounds = array<i64: 128, 8>}]} {
    %c0 = arith.constant 0 : index
    %c0_0 = arith.constant 0 : index
    %0 = vector.load %arg1[%c0, %c0_0] : memref<128x16xf32, #tpu.memory_space<vmem>>, vector<128x16xf32>
    %1 = tpu.transpose %0, [1, 0] : vector<128x16xf32> -> vector<16x128xf32>
    %c0_1 = arith.constant 0 : index
    %c0_2 = arith.constant 0 : index
    %2 = vector.load %arg2[%c0_1, %c0_2] : memref<64x16xbf16, #tpu.memory_space<vmem>>, vector<64x16xbf16>
    %3 = arith.truncf %1 : vector<16x128xf32> to vector<16x128xbf16>
    %cst = arith.constant dense<0.000000e+00> : vector<64x128xf32>
    %4 = tpu.matmul %2, %3, %cst {dimension_numbers = #tpu.dot_dimension_numbers<[1], [0], [0], [1], [0, 0, 1, 1], [], []>} : vector<64x16xbf16>, vector<16x128xbf16>, vector<64x128xf32> -> vector<64x128xf32>
    %c0_3 = arith.constant 0 : index
    %c0_4 = arith.constant 0 : index
    %5 = vector.load %arg3[%c0_3, %c0_4] : memref<64x1xf32, #tpu.memory_space<vmem>>, vector<64x1xf32>
    %6 = vector.broadcast %5 : vector<64x1xf32> to vector<64x128xf32>
    %7 = arith.addf %4, %6 : vector<64x128xf32>
    %cst_5 = arith.constant 0.000000e+00 : f32
    %8 = vector.broadcast %cst_5 : f32 to vector<64x128xf32>
    %9 = arith.maximumf %7, %8 : vector<64x128xf32>
    %c0_6 = arith.constant 0 : index
    %c0_7 = arith.constant 0 : index
    %10 = vector.load %arg4[%c0_6, %c0_7] : memref<32x64xbf16, #tpu.memory_space<vmem>>, vector<32x64xbf16>
    %11 = arith.truncf %9 : vector<64x128xf32> to vector<64x128xbf16>
    %cst_8 = arith.constant dense<0.000000e+00> : vector<32x128xf32>
    %12 = tpu.matmul %10, %11, %cst_8 {dimension_numbers = #tpu.dot_dimension_numbers<[1], [0], [0], [1], [0, 0, 1, 1], [], []>} : vector<32x64xbf16>, vector<64x128xbf16>, vector<32x128xf32> -> vector<32x128xf32>
    %c0_9 = arith.constant 0 : index
    %c0_10 = arith.constant 0 : index
    %13 = vector.load %arg5[%c0_9, %c0_10] : memref<32x1xf32, #tpu.memory_space<vmem>>, vector<32x1xf32>
    %14 = vector.broadcast %13 : vector<32x1xf32> to vector<32x128xf32>
    %15 = arith.addf %12, %14 : vector<32x128xf32>
    %cst_11 = arith.constant 0.000000e+00 : f32
    %16 = vector.broadcast %cst_11 : f32 to vector<32x128xf32>
    %17 = arith.maximumf %15, %16 : vector<32x128xf32>
    %c0_12 = arith.constant 0 : index
    %c0_13 = arith.constant 0 : index
    %18 = vector.load %arg6[%c0_12, %c0_13] : memref<8x32xbf16, #tpu.memory_space<vmem>>, vector<8x32xbf16>
    %19 = arith.truncf %17 : vector<32x128xf32> to vector<32x128xbf16>
    %cst_14 = arith.constant dense<0.000000e+00> : vector<8x128xf32>
    %20 = tpu.matmul %18, %19, %cst_14 {dimension_numbers = #tpu.dot_dimension_numbers<[1], [0], [0], [1], [0, 0, 1, 1], [], []>} : vector<8x32xbf16>, vector<32x128xbf16>, vector<8x128xf32> -> vector<8x128xf32>
    %c0_15 = arith.constant 0 : index
    %c0_16 = arith.constant 0 : index
    %21 = vector.load %arg7[%c0_15, %c0_16] : memref<8x1xf32, #tpu.memory_space<vmem>>, vector<8x1xf32>
    %22 = vector.broadcast %21 : vector<8x1xf32> to vector<8x128xf32>
    %23 = arith.addf %20, %22 : vector<8x128xf32>
    %24 = tpu.transpose %23, [1, 0] : vector<8x128xf32> -> vector<128x8xf32>
    %c0_17 = arith.constant 0 : index
    %c0_18 = arith.constant 0 : index
    %25 = vector.load %arg15[%c0_17, %c0_18] : memref<128x8xf32, #tpu.memory_space<vmem>>, vector<128x8xf32>
    tpu.vector_store %arg15[%c0_17, %c0_18], %24 {strides = array<i32>} : memref<128x8xf32, #tpu.memory_space<vmem>>, vector<128x8xf32>,
    %c0_19 = arith.constant 0 : index
    %c0_20 = arith.constant 0 : index
    %26 = vector.load %arg8[%c0_19, %c0_20] : memref<32x8xbf16, #tpu.memory_space<vmem>>, vector<32x8xbf16>
    %27 = arith.truncf %23 : vector<8x128xf32> to vector<8x128xbf16>
    %cst_21 = arith.constant dense<0.000000e+00> : vector<32x128xf32>
    %28 = tpu.matmul %26, %27, %cst_21 {dimension_numbers = #tpu.dot_dimension_numbers<[1], [0], [0], [1], [0, 0, 1, 1], [], []>} : vector<32x8xbf16>, vector<8x128xbf16>, vector<32x128xf32> -> vector<32x128xf32>
    %c0_22 = arith.constant 0 : index
    %c0_23 = arith.constant 0 : index
    %29 = vector.load %arg9[%c0_22, %c0_23] : memref<32x1xf32, #tpu.memory_space<vmem>>, vector<32x1xf32>
    %30 = vector.broadcast %29 : vector<32x1xf32> to vector<32x128xf32>
    %31 = arith.addf %28, %30 : vector<32x128xf32>
    %cst_24 = arith.constant 0.000000e+00 : f32
    %32 = vector.broadcast %cst_24 : f32 to vector<32x128xf32>
    %33 = arith.maximumf %31, %32 : vector<32x128xf32>
    %c0_25 = arith.constant 0 : index
    %c0_26 = arith.constant 0 : index
    %34 = vector.load %arg10[%c0_25, %c0_26] : memref<64x32xbf16, #tpu.memory_space<vmem>>, vector<64x32xbf16>
    %35 = arith.truncf %33 : vector<32x128xf32> to vector<32x128xbf16>
    %cst_27 = arith.constant dense<0.000000e+00> : vector<64x128xf32>
    %36 = tpu.matmul %34, %35, %cst_27 {dimension_numbers = #tpu.dot_dimension_numbers<[1], [0], [0], [1], [0, 0, 1, 1], [], []>} : vector<64x32xbf16>, vector<32x128xbf16>, vector<64x128xf32> -> vector<64x128xf32>
    %c0_28 = arith.constant 0 : index
    %c0_29 = arith.constant 0 : index
    %37 = vector.load %arg11[%c0_28, %c0_29] : memref<64x1xf32, #tpu.memory_space<vmem>>, vector<64x1xf32>
    %38 = vector.broadcast %37 : vector<64x1xf32> to vector<64x128xf32>
    %39 = arith.addf %36, %38 : vector<64x128xf32>
    %cst_30 = arith.constant 0.000000e+00 : f32
    %40 = vector.broadcast %cst_30 : f32 to vector<64x128xf32>
    %41 = arith.maximumf %39, %40 : vector<64x128xf32>
    %c0_31 = arith.constant 0 : index
    %c0_32 = arith.constant 0 : index
    %42 = vector.load %arg12[%c0_31, %c0_32] : memref<16x64xbf16, #tpu.memory_space<vmem>>, vector<16x64xbf16>
    %43 = arith.truncf %41 : vector<64x128xf32> to vector<64x128xbf16>
    %cst_33 = arith.constant dense<0.000000e+00> : vector<16x128xf32>
    %44 = tpu.matmul %42, %43, %cst_33 {dimension_numbers = #tpu.dot_dimension_numbers<[1], [0], [0], [1], [0, 0, 1, 1], [], []>} : vector<16x64xbf16>, vector<64x128xbf16>, vector<16x128xf32> -> vector<16x128xf32>
    %c0_34 = arith.constant 0 : index
    %c0_35 = arith.constant 0 : index
    %45 = vector.load %arg13[%c0_34, %c0_35] : memref<16x1xf32, #tpu.memory_space<vmem>>, vector<16x1xf32>
    %46 = vector.broadcast %45 : vector<16x1xf32> to vector<16x128xf32>
    %47 = arith.addf %44, %46 : vector<16x128xf32>
    %48 = tpu.transpose %47, [1, 0] : vector<16x128xf32> -> vector<128x16xf32>
    %c0_36 = arith.constant 0 : index
    %c0_37 = arith.constant 0 : index
    %49 = vector.load %arg14[%c0_36, %c0_37] : memref<128x16xf32, #tpu.memory_space<vmem>>, vector<128x16xf32>
    tpu.vector_store %arg14[%c0_36, %c0_37], %48 {strides = array<i32>} : memref<128x16xf32, #tpu.memory_space<vmem>>, vector<128x16xf32>,
    return
  }
  func.func @transform_0(%arg0: i32) -> (i32, i32) {
    %c0_i32 = arith.constant 0 : i32
    %c0_i32_0 = arith.constant 0 : i32
    return %arg0, %c0_i32 : i32, i32
  }
  func.func @transform_1(%arg0: i32) -> (i32, i32) {
    %c0_i32 = arith.constant 0 : i32
    %c0_i32_0 = arith.constant 0 : i32
    %c0_i32_1 = arith.constant 0 : i32
    return %c0_i32, %c0_i32_0 : i32, i32
  }
  func.func @transform_2(%arg0: i32) -> (i32, i32) {
    %c0_i32 = arith.constant 0 : i32
    %c0_i32_0 = arith.constant 0 : i32
    %c0_i32_1 = arith.constant 0 : i32
    return %c0_i32, %c0_i32_0 : i32, i32
  }
  func.func @transform_3(%arg0: i32) -> (i32, i32) {
    %c0_i32 = arith.constant 0 : i32
    %c0_i32_0 = arith.constant 0 : i32
    %c0_i32_1 = arith.constant 0 : i32
    return %c0_i32, %c0_i32_0 : i32, i32
  }
  func.func @transform_4(%arg0: i32) -> (i32, i32) {
    %c0_i32 = arith.constant 0 : i32
    %c0_i32_0 = arith.constant 0 : i32
    %c0_i32_1 = arith.constant 0 : i32
    return %c0_i32, %c0_i32_0 : i32, i32
  }
  func.func @transform_5(%arg0: i32) -> (i32, i32) {
    %c0_i32 = arith.constant 0 : i32
    %c0_i32_0 = arith.constant 0 : i32
    %c0_i32_1 = arith.constant 0 : i32
    return %c0_i32, %c0_i32_0 : i32, i32
  }
  func.func @transform_6(%arg0: i32) -> (i32, i32) {
    %c0_i32 = arith.constant 0 : i32
    %c0_i32_0 = arith.constant 0 : i32
    %c0_i32_1 = arith.constant 0 : i32
    return %c0_i32, %c0_i32_0 : i32, i32
  }
  func.func @transform_7(%arg0: i32) -> (i32, i32) {
    %c0_i32 = arith.constant 0 : i32
    %c0_i32_0 = arith.constant 0 : i32
    %c0_i32_1 = arith.constant 0 : i32
    return %c0_i32, %c0_i32_0 : i32, i32
  }
  func.func @transform_8(%arg0: i32) -> (i32, i32) {
    %c0_i32 = arith.constant 0 : i32
    %c0_i32_0 = arith.constant 0 : i32
    %c0_i32_1 = arith.constant 0 : i32
    return %c0_i32, %c0_i32_0 : i32, i32
  }
  func.func @transform_9(%arg0: i32) -> (i32, i32) {
    %c0_i32 = arith.constant 0 : i32
    %c0_i32_0 = arith.constant 0 : i32
    %c0_i32_1 = arith.constant 0 : i32
    return %c0_i32, %c0_i32_0 : i32, i32
  }
  func.func @transform_10(%arg0: i32) -> (i32, i32) {
    %c0_i32 = arith.constant 0 : i32
    %c0_i32_0 = arith.constant 0 : i32
    %c0_i32_1 = arith.constant 0 : i32
    return %c0_i32, %c0_i32_0 : i32, i32
  }
  func.func @transform_11(%arg0: i32) -> (i32, i32) {
    %c0_i32 = arith.constant 0 : i32
    %c0_i32_0 = arith.constant 0 : i32
    %c0_i32_1 = arith.constant 0 : i32
    return %c0_i32, %c0_i32_0 : i32, i32
  }
  func.func @transform_12(%arg0: i32) -> (i32, i32) {
    %c0_i32 = arith.constant 0 : i32
    %c0_i32_0 = arith.constant 0 : i32
    %c0_i32_1 = arith.constant 0 : i32
    return %c0_i32, %c0_i32_0 : i32, i32
  }
  func.func @transform_13(%arg0: i32) -> (i32, i32) {
    %c0_i32 = arith.constant 0 : i32
    %c0_i32_0 = arith.constant 0 : i32
    return %arg0, %c0_i32 : i32, i32
  }
  func.func @transform_14(%arg0: i32) -> (i32, i32) {
    %c0_i32 = arith.constant 0 : i32
    %c0_i32_0 = arith.constant 0 : i32
    return %arg0, %c0_i32 : i32, i32
  }
}

</mosaic_0001>

<llo_original>
// kernel: tpu_custom_call.1
$region0: #{tpu_custom_call.1}
  #allocation0 [shape = 'u32[]', space=smem, size = 0x4, offset = 0x4, fixed_abs, tag = 'smem constant byte address 0x4 - core index']
  #allocation1 [shape = 'u32[144,128]{1,0:T(1,128)}', space=vmem, size = 0x12000, scoped, tag = 'internal scratch']
  %s0 = inlined_call_operand.vmem [shape: f32[256,16], index: 0, kind: input, shape index: {}]
  %s1 = inlined_call_operand.vmem [shape: bf16[64,16], index: 1, kind: input, shape index: {}]
  %s2 = inlined_call_operand.vmem [shape: f32[64,1], index: 2, kind: input, shape index: {}]
  %s3 = inlined_call_operand.vmem [shape: bf16[32,64], index: 3, kind: input, shape index: {}]
  %s4 = inlined_call_operand.vmem [shape: f32[32,1], index: 4, kind: input, shape index: {}]
  %s5 = inlined_call_operand.vmem [shape: bf16[8,32], index: 5, kind: input, shape index: {}]
  %s6 = inlined_call_operand.vmem [shape: f32[8,1], index: 6, kind: input, shape index: {}]
  %s7 = inlined_call_operand.vmem [shape: bf16[32,8], index: 7, kind: input, shape index: {}]
  %s8 = inlined_call_operand.vmem [shape: f32[32,1], index: 8, kind: input, shape index: {}]
  %s9 = inlined_call_operand.vmem [shape: bf16[64,32], index: 9, kind: input, shape index: {}]
  %s10 = inlined_call_operand.vmem [shape: f32[64,1], index: 10, kind: input, shape index: {}]
  %s11 = inlined_call_operand.vmem [shape: bf16[16,64], index: 11, kind: input, shape index: {}]
  %s12 = inlined_call_operand.vmem [shape: f32[16,1], index: 12, kind: input, shape index: {}]
  %s13 = inlined_call_operand.vmem [shape: f32[256,16], index: 13, kind: output, shape index: {0}]
  %s14 = inlined_call_operand.vmem [shape: f32[256,8], index: 14, kind: output, shape index: {1}]
  %15 = xla_tuple %s13, %s14
  %s16 = sld [smem:[#allocation0]]
  $region93: #{tpu_custom_call.1} parent=0
    _
  %s18 = ssub.s32 1, %s16
  %s19 = scalar_select 0, %s18, %s16
  loop: start=0, step=1, limit=4
  $region2: #{tpu_custom_call.1} parent=0 // loop_pre_header
    _
  $region3: #{tpu_custom_call.1} parent=0 // loop_header
    %s21 = sphi 0, %s25
    %p22 = scmp.ge.s32.totalorder %s21, 4
    %s31 = sphi 0, %s33
    %s34 = sphi 0, %s31
    %s35 = sphi 0, %s34
    %s51 = sphi 0, %s35
    %s55 = sphi 0, %s55
    %s57 = sphi 0, %s55
    %s58 = sphi 0, %s57
    %s72 = sphi 0, %s58
    %s76 = sphi 0, %s76
    %s78 = sphi 0, %s76
    %s79 = sphi 0, %s78
    %s93 = sphi 0, %s79
    %s97 = sphi 0, %s97
    %s99 = sphi 0, %s97
    %s100 = sphi 0, %s99
    %s114 = sphi 0, %s100
    %s118 = sphi 0, %s118
    %s120 = sphi 0, %s118
    %s121 = sphi 0, %s120
    %s135 = sphi 0, %s121
    %s139 = sphi 0, %s139
    %s141 = sphi 0, %s139
    %s142 = sphi 0, %s141
    %s156 = sphi 0, %s142
    %s160 = sphi 0, %s160
    %s162 = sphi 0, %s160
    %s163 = sphi 0, %s162
    %s177 = sphi 0, %s163
    %s181 = sphi 0, %s181
    %s183 = sphi 0, %s181
    %s184 = sphi 0, %s183
    %s198 = sphi 0, %s184
    %s202 = sphi 0, %s202
    %s204 = sphi 0, %s202
    %s205 = sphi 0, %s204
    %s219 = sphi 0, %s205
    %s223 = sphi 0, %s223
    %s225 = sphi 0, %s223
    %s226 = sphi 0, %s225
    %s240 = sphi 0, %s226
    %s244 = sphi 0, %s244
    %s246 = sphi 0, %s244
    %s247 = sphi 0, %s246
    %s261 = sphi 0, %s247
    %s265 = sphi 0, %s265
    %s267 = sphi 0, %s265
    %s268 = sphi 0, %s267
    %s282 = sphi 0, %s268
    %s286 = sphi 0, %s286
    %s288 = sphi 0, %s286
    %s289 = sphi 0, %s288
    %s303 = sphi 0, %s289
    %s309 = sphi 0, %s311
    %s312 = sphi 0, %s309
    %s313 = sphi 0, %s312
    %s329 = sphi 0, %s313
    %s335 = sphi 0, %s337
    %s338 = sphi 0, %s335
    %s339 = sphi 0, %s338
    %s355 = sphi 0, %s339
  $region4: #{tpu_custom_call.1} parent=0 // loop_header_branch
    %24 = sbr.rel (%p22) target = $region8
  $region5: #{tpu_custom_call.1} parent=0 // loop_body
    %s26 = ssub.s32 %s21, 1
    %s27 = ssub.s32 %s21, 2
    %s28 = sadd.s32 %s21, 1
    %s29 = ssub.s32 %s21, %s28
    %p30 = scmp.eq.s32.totalorder %s29, 0
    %s32 = sadd.s32 %s31, 1
    %s33 = scalar_select %p30, %s31, %s32
    %p36 = pneg %p30
    %p37 = scmp.eq.s32.totalorder %s21, 1
    %p38 = por %p36, %p37
    %p39 = scmp.ne.s32.totalorder %s31, %s34
    %p40 = scmp.eq.s32.totalorder %s21, 0
    %p41 = por %p39, %p40
    %p42 = scmp.ne.s32.totalorder %s31, %s34
    %p43 = scmp.eq.s32.totalorder %s26, 1
    %p44 = por %p42, %p43
    %p45 = scmp.ne.s32.totalorder %s34, %s35
    %p46 = scmp.eq.s32.totalorder %s26, 0
    %p47 = por %p45, %p46
    %p48 = scmp.ne.s32.totalorder %s34, %s35
    %p49 = scmp.eq.s32.totalorder %s27, 1
    %p50 = por %p48, %p49
    %p52 = scmp.ne.s32.totalorder %s35, %s51
    %p53 = scmp.eq.s32.totalorder %s27, 0
    %p54 = por %p52, %p53
    %s56 = sadd.s32 %s55, 1
    %p59 = scmp.eq.s32.totalorder %s21, 1
    %p60 = scmp.ne.s32.totalorder %s55, %s57
    %p61 = scmp.eq.s32.totalorder %s21, 0
    %p62 = por %p60, %p61
    %p63 = scmp.ne.s32.totalorder %s55, %s57
    %p64 = scmp.eq.s32.totalorder %s26, 1
    %p65 = por %p63, %p64
    %p66 = scmp.ne.s32.totalorder %s57, %s58
    %p67 = scmp.eq.s32.totalorder %s26, 0
    %p68 = por %p66, %p67
    %p69 = scmp.ne.s32.totalorder %s57, %s58
    %p70 = scmp.eq.s32.totalorder %s27, 1
    %p71 = por %p69, %p70
    %p73 = scmp.ne.s32.totalorder %s58, %s72
    %p74 = scmp.eq.s32.totalorder %s27, 0
    %p75 = por %p73, %p74
    %s77 = sadd.s32 %s76, 1
    %p80 = scmp.eq.s32.totalorder %s21, 1
    %p81 = scmp.ne.s32.totalorder %s76, %s78
    %p82 = scmp.eq.s32.totalorder %s21, 0
    %p83 = por %p81, %p82
    %p84 = scmp.ne.s32.totalorder %s76, %s78
    %p85 = scmp.eq.s32.totalorder %s26, 1
    %p86 = por %p84, %p85
    %p87 = scmp.ne.s32.totalorder %s78, %s79
    %p88 = scmp.eq.s32.totalorder %s26, 0
    %p89 = por %p87, %p88
    %p90 = scmp.ne.s32.totalorder %s78, %s79
    %p91 = scmp.eq.s32.totalorder %s27, 1
    %p92 = por %p90, %p91
    %p94 = scmp.ne.s32.totalorder %s79, %s93
    %p95 = scmp.eq.s32.totalorder %s27, 0
    %p96 = por %p94, %p95
    %s98 = sadd.s32 %s97, 1
    %p101 = scmp.eq.s32.totalorder %s21, 1
    %p102 = scmp.ne.s32.totalorder %s97, %s99
    %p103 = scmp.eq.s32.totalorder %s21, 0
    %p104 = por %p102, %p103
    %p105 = scmp.ne.s32.totalorder %s97, %s99
    %p106 = scmp.eq.s32.totalorder %s26, 1
    %p107 = por %p105, %p106
    %p108 = scmp.ne.s32.totalorder %s99, %s100
    %p109 = scmp.eq.s32.totalorder %s26, 0
    %p110 = por %p108, %p109
    %p111 = scmp.ne.s32.totalorder %s99, %s100
    %p112 = scmp.eq.s32.totalorder %s27, 1
    %p113 = por %p111, %p112
    %p115 = scmp.ne.s32.totalorder %s100, %s114
    %p116 = scmp.eq.s32.totalorder %s27, 0
    %p117 = por %p115, %p116
    %s119 = sadd.s32 %s118, 1
    %p122 = scmp.eq.s32.totalorder %s21, 1
    %p123 = scmp.ne.s32.totalorder %s118, %s120
    %p124 = scmp.eq.s32.totalorder %s21, 0
    %p125 = por %p123, %p124
    %p126 = scmp.ne.s32.totalorder %s118, %s120
    %p127 = scmp.eq.s32.totalorder %s26, 1
    %p128 = por %p126, %p127
    %p129 = scmp.ne.s32.totalorder %s120, %s121
    %p130 = scmp.eq.s32.totalorder %s26, 0
    %p131 = por %p129, %p130
    %p132 = scmp.ne.s32.totalorder %s120, %s121
    %p133 = scmp.eq.s32.totalorder %s27, 1
    %p134 = por %p132, %p133
    %p136 = scmp.ne.s32.totalorder %s121, %s135
    %p137 = scmp.eq.s32.totalorder %s27, 0
    %p138 = por %p136, %p137
    %s140 = sadd.s32 %s139, 1
    %p143 = scmp.eq.s32.totalorder %s21, 1
    %p144 = scmp.ne.s32.totalorder %s139, %s141
    %p145 = scmp.eq.s32.totalorder %s21, 0
    %p146 = por %p144, %p145
    %p147 = scmp.ne.s32.totalorder %s139, %s141
    %p148 = scmp.eq.s32.totalorder %s26, 1
    %p149 = por %p147, %p148
    %p150 = scmp.ne.s32.totalorder %s141, %s142
    %p151 = scmp.eq.s32.totalorder %s26, 0
    %p152 = por %p150, %p151
    %p153 = scmp.ne.s32.totalorder %s141, %s142
    %p154 = scmp.eq.s32.totalorder %s27, 1
    %p155 = por %p153, %p154
    %p157 = scmp.ne.s32.totalorder %s142, %s156
    %p158 = scmp.eq.s32.totalorder %s27, 0
    %p159 = por %p157, %p158
    %s161 = sadd.s32 %s160, 1
    %p164 = scmp.eq.s32.totalorder %s21, 1
    %p165 = scmp.ne.s32.totalorder %s160, %s162
    %p166 = scmp.eq.s32.totalorder %s21, 0
    %p167 = por %p165, %p166
    %p168 = scmp.ne.s32.totalorder %s160, %s162
    %p169 = scmp.eq.s32.totalorder %s26, 1
    %p170 = por %p168, %p169
    %p171 = scmp.ne.s32.totalorder %s162, %s163
    %p172 = scmp.eq.s32.totalorder %s26, 0
    %p173 = por %p171, %p172
    %p174 = scmp.ne.s32.totalorder %s162, %s163
    %p175 = scmp.eq.s32.totalorder %s27, 1
    %p176 = por %p174, %p175
    %p178 = scmp.ne.s32.totalorder %s163, %s177
    %p179 = scmp.eq.s32.totalorder %s27, 0
    %p180 = por %p178, %p179
    %s182 = sadd.s32 %s181, 1
    %p185 = scmp.eq.s32.totalorder %s21, 1
    %p186 = scmp.ne.s32.totalorder %s181, %s183
    %p187 = scmp.eq.s32.totalorder %s21, 0
    %p188 = por %p186, %p187
    %p189 = scmp.ne.s32.totalorder %s181, %s183
    %p190 = scmp.eq.s32.totalorder %s26, 1
    %p191 = por %p189, %p190
    %p192 = scmp.ne.s32.totalorder %s183, %s184
    %p193 = scmp.eq.s32.totalorder %s26, 0
    %p194 = por %p192, %p193
    %p195 = scmp.ne.s32.totalorder %s183, %s184
    %p196 = scmp.eq.s32.totalorder %s27, 1
    %p197 = por %p195, %p196
    %p199 = scmp.ne.s32.totalorder %s184, %s198
    %p200 = scmp.eq.s32.totalorder %s27, 0
    %p201 = por %p199, %p200
    %s203 = sadd.s32 %s202, 1
    %p206 = scmp.eq.s32.totalorder %s21, 1
    %p207 = scmp.ne.s32.totalorder %s202, %s204
    %p208 = scmp.eq.s32.totalorder %s21, 0
    %p209 = por %p207, %p208
    %p210 = scmp.ne.s32.totalorder %s202, %s204
    %p211 = scmp.eq.s32.totalorder %s26, 1
    %p212 = por %p210, %p211
    %p213 = scmp.ne.s32.totalorder %s204, %s205
    %p214 = scmp.eq.s32.totalorder %s26, 0
    %p215 = por %p213, %p214
    %p216 = scmp.ne.s32.totalorder %s204, %s205
    %p217 = scmp.eq.s32.totalorder %s27, 1
    %p218 = por %p216, %p217
    %p220 = scmp.ne.s32.totalorder %s205, %s219
    %p221 = scmp.eq.s32.totalorder %s27, 0
    %p222 = por %p220, %p221
    %s224 = sadd.s32 %s223, 1
    %p227 = scmp.eq.s32.totalorder %s21, 1
    %p228 = scmp.ne.s32.totalorder %s223, %s225
    %p229 = scmp.eq.s32.totalorder %s21, 0
    %p230 = por %p228, %p229
    %p231 = scmp.ne.s32.totalorder %s223, %s225
    %p232 = scmp.eq.s32.totalorder %s26, 1
    %p233 = por %p231, %p232
    %p234 = scmp.ne.s32.totalorder %s225, %s226
    %p235 = scmp.eq.s32.totalorder %s26, 0
    %p236 = por %p234, %p235
    %p237 = scmp.ne.s32.totalorder %s225, %s226
    %p238 = scmp.eq.s32.totalorder %s27, 1
    %p239 = por %p237, %p238
    %p241 = scmp.ne.s32.totalorder %s226, %s240
    %p242 = scmp.eq.s32.totalorder %s27, 0
    %p243 = por %p241, %p242
    %s245 = sadd.s32 %s244, 1
    %p248 = scmp.eq.s32.totalorder %s21, 1
    %p249 = scmp.ne.s32.totalorder %s244, %s246
    %p250 = scmp.eq.s32.totalorder %s21, 0
    %p251 = por %p249, %p250
    %p252 = scmp.ne.s32.totalorder %s244, %s246
    %p253 = scmp.eq.s32.totalorder %s26, 1
    %p254 = por %p252, %p253
    %p255 = scmp.ne.s32.totalorder %s246, %s247
    %p256 = scmp.eq.s32.totalorder %s26, 0
    %p257 = por %p255, %p256
    %p258 = scmp.ne.s32.totalorder %s246, %s247
    %p259 = scmp.eq.s32.totalorder %s27, 1
    %p260 = por %p258, %p259
    %p262 = scmp.ne.s32.totalorder %s247, %s261
    %p263 = scmp.eq.s32.totalorder %s27, 0
    %p264 = por %p262, %p263
    %s266 = sadd.s32 %s265, 1
    %p269 = scmp.eq.s32.totalorder %s21, 1
    %p270 = scmp.ne.s32.totalorder %s265, %s267
    %p271 = scmp.eq.s32.totalorder %s21, 0
    %p272 = por %p270, %p271
    %p273 = scmp.ne.s32.totalorder %s265, %s267
    %p274 = scmp.eq.s32.totalorder %s26, 1
    %p275 = por %p273, %p274
    %p276 = scmp.ne.s32.totalorder %s267, %s268
    %p277 = scmp.eq.s32.totalorder %s26, 0
    %p278 = por %p276, %p277
    %p279 = scmp.ne.s32.totalorder %s267, %s268
    %p280 = scmp.eq.s32.totalorder %s27, 1
    %p281 = por %p279, %p280
    %p283 = scmp.ne.s32.totalorder %s268, %s282
    %p284 = scmp.eq.s32.totalorder %s27, 0
    %p285 = por %p283, %p284
    %s287 = sadd.s32 %s286, 1
    %p290 = scmp.eq.s32.totalorder %s21, 1
    %p291 = scmp.ne.s32.totalorder %s286, %s288
    %p292 = scmp.eq.s32.totalorder %s21, 0
    %p293 = por %p291, %p292
    %p294 = scmp.ne.s32.totalorder %s286, %s288
    %p295 = scmp.eq.s32.totalorder %s26, 1
    %p296 = por %p294, %p295
    %p297 = scmp.ne.s32.totalorder %s288, %s289
    %p298 = scmp.eq.s32.totalorder %s26, 0
    %p299 = por %p297, %p298
    %p300 = scmp.ne.s32.totalorder %s288, %s289
    %p301 = scmp.eq.s32.totalorder %s27, 1
    %p302 = por %p300, %p301
    %p304 = scmp.ne.s32.totalorder %s289, %s303
    %p305 = scmp.eq.s32.totalorder %s27, 0
    %p306 = por %p304, %p305
    %s307 = ssub.s32 %s21, %s28
    %p308 = scmp.eq.s32.totalorder %s307, 0
    %s310 = sadd.s32 %s309, 1
    %s311 = scalar_select %p308, %s309, %s310
    %p314 = pneg %p308
    %p315 = scmp.eq.s32.totalorder %s21, 1
    %p316 = por %p314, %p315
    %p317 = scmp.ne.s32.totalorder %s309, %s312
    %p318 = scmp.eq.s32.totalorder %s21, 0
    %p319 = por %p317, %p318
    %p320 = scmp.ne.s32.totalorder %s309, %s312
    %p321 = scmp.eq.s32.totalorder %s26, 1
    %p322 = por %p320, %p321
    %p323 = scmp.ne.s32.totalorder %s312, %s313
    %p324 = scmp.eq.s32.totalorder %s26, 0
    %p325 = por %p323, %p324
    %p326 = scmp.ne.s32.totalorder %s312, %s313
    %p327 = scmp.eq.s32.totalorder %s27, 1
    %p328 = por %p326, %p327
    %p330 = scmp.ne.s32.totalorder %s313, %s329
    %p331 = scmp.eq.s32.totalorder %s27, 0
    %p332 = por %p330, %p331
    %s333 = ssub.s32 %s21, %s28
    %p334 = scmp.eq.s32.totalorder %s333, 0
    %s336 = sadd.s32 %s335, 1
    %s337 = scalar_select %p334, %s335, %s336
    %p340 = pneg %p334
    %p341 = scmp.eq.s32.totalorder %s21, 1
    %p342 = por %p340, %p341
    %p343 = scmp.ne.s32.totalorder %s335, %s338
    %p344 = scmp.eq.s32.totalorder %s21, 0
    %p345 = por %p343, %p344
    %p346 = scmp.ne.s32.totalorder %s335, %s338
    %p347 = scmp.eq.s32.totalorder %s26, 1
    %p348 = por %p346, %p347
    %p349 = scmp.ne.s32.totalorder %s338, %s339
    %p350 = scmp.eq.s32.totalorder %s26, 0
    %p351 = por %p349, %p350
    %p352 = scmp.ne.s32.totalorder %s338, %s339
    %p353 = scmp.eq.s32.totalorder %s27, 1
    %p354 = por %p352, %p353
    %p356 = scmp.ne.s32.totalorder %s339, %s355
    %p357 = scmp.eq.s32.totalorder %s27, 0
    %p358 = por %p356, %p357
    %p359 = scmp.le.s32.totalorder 1, %s21
    %p360 = scmp.lt.s32.totalorder %s21, 3
    %p361 = pnand %p359, %p360
    %p362 = pneg %p361
    // Predicated region
    $region9: #{tpu_custom_call.1} parent=5 // pred_check
      _
    $region10: #{tpu_custom_call.1} parent=5 // pred_check_branch
      %364 = sbr.rel (%p361) target = $region12
    $region11: #{tpu_custom_call.1} parent=5 // pred_region
      %s365 = ssub.s32 %s21, 1
      // Predicated region
      $region13: #{tpu_custom_call.1} parent=11 // pred_check
        %p366 = pneg %p68
      $region14: #{tpu_custom_call.1} parent=11 // pred_check_branch
        %368 = sbr.rel (%p366) target = $region16
      $region15: #{tpu_custom_call.1} parent=11 // pred_region
        _
      $region16: #{tpu_custom_call.1} parent=11 // pred_fallthru
        _
      // Predicated region
      $region17: #{tpu_custom_call.1} parent=11 // pred_check
        %p369 = pneg %p89
      $region18: #{tpu_custom_call.1} parent=11 // pred_check_branch
        %371 = sbr.rel (%p369) target = $region20
      $region19: #{tpu_custom_call.1} parent=11 // pred_region
        _
      $region20: #{tpu_custom_call.1} parent=11 // pred_fallthru
        _
      // Predicated region
      $region21: #{tpu_custom_call.1} parent=11 // pred_check
        %p372 = pneg %p110
      $region22: #{tpu_custom_call.1} parent=11 // pred_check_branch
        %374 = sbr.rel (%p372) target = $region24
      $region23: #{tpu_custom_call.1} parent=11 // pred_region
        _
      $region24: #{tpu_custom_call.1} parent=11 // pred_fallthru
        _
      // Predicated region
      $region25: #{tpu_custom_call.1} parent=11 // pred_check
        %p375 = pneg %p131
      $region26: #{tpu_custom_call.1} parent=11 // pred_check_branch
        %377 = sbr.rel (%p375) target = $region28
      $region27: #{tpu_custom_call.1} parent=11 // pred_region
        _
      $region28: #{tpu_custom_call.1} parent=11 // pred_fallthru
        _
      // Predicated region
      $region29: #{tpu_custom_call.1} parent=11 // pred_check
        %p378 = pneg %p152
      $region30: #{tpu_custom_call.1} parent=11 // pred_check_branch
        %380 = sbr.rel (%p378) target = $region32
      $region31: #{tpu_custom_call.1} parent=11 // pred_region
        _
      $region32: #{tpu_custom_call.1} parent=11 // pred_fallthru
        _
      // Predicated region
      $region33: #{tpu_custom_call.1} parent=11 // pred_check
        %p381 = pneg %p173
      $region34: #{tpu_custom_call.1} parent=11 // pred_check_branch
        %383 = sbr.rel (%p381) target = $region36
      $region35: #{tpu_custom_call.1} parent=11 // pred_region
        _
      $region36: #{tpu_custom_call.1} parent=11 // pred_fallthru
        _
      // Predicated region
      $region37: #{tpu_custom_call.1} parent=11 // pred_check
        %p384 = pneg %p194
      $region38: #{tpu_custom_call.1} parent=11 // pred_check_branch
        %386 = sbr.rel (%p384) target = $region40
      $region39: #{tpu_custom_call.1} parent=11 // pred_region
        _
      $region40: #{tpu_custom_call.1} parent=11 // pred_fallthru
        _
      // Predicated region
      $region41: #{tpu_custom_call.1} parent=11 // pred_check
        %p387 = pneg %p215
      $region42: #{tpu_custom_call.1} parent=11 // pred_check_branch
        %389 = sbr.rel (%p387) target = $region44
      $region43: #{tpu_custom_call.1} parent=11 // pred_region
        _
      $region44: #{tpu_custom_call.1} parent=11 // pred_fallthru
        _
      // Predicated region
      $region45: #{tpu_custom_call.1} parent=11 // pred_check
        %p390 = pneg %p236
      $region46: #{tpu_custom_call.1} parent=11 // pred_check_branch
        %392 = sbr.rel (%p390) target = $region48
      $region47: #{tpu_custom_call.1} parent=11 // pred_region
        _
      $region48: #{tpu_custom_call.1} parent=11 // pred_fallthru
        _
      // Predicated region
      $region49: #{tpu_custom_call.1} parent=11 // pred_check
        %p393 = pneg %p257
      $region50: #{tpu_custom_call.1} parent=11 // pred_check_branch
        %395 = sbr.rel (%p393) target = $region52
      $region51: #{tpu_custom_call.1} parent=11 // pred_region
        _
      $region52: #{tpu_custom_call.1} parent=11 // pred_fallthru
        _
      // Predicated region
      $region53: #{tpu_custom_call.1} parent=11 // pred_check
        %p396 = pneg %p278
      $region54: #{tpu_custom_call.1} parent=11 // pred_check_branch
        %398 = sbr.rel (%p396) target = $region56
      $region55: #{tpu_custom_call.1} parent=11 // pred_region
        _
      $region56: #{tpu_custom_call.1} parent=11 // pred_fallthru
        _
      // Predicated region
      $region57: #{tpu_custom_call.1} parent=11 // pred_check
        %p399 = pneg %p299
      $region58: #{tpu_custom_call.1} parent=11 // pred_check_branch
        %401 = sbr.rel (%p399) target = $region60
      $region59: #{tpu_custom_call.1} parent=11 // pred_region
        _
      $region60: #{tpu_custom_call.1} parent=11 // pred_fallthru
        _
    $region12: #{tpu_custom_call.1} parent=5 // pred_fallthru
      _
    %p402 = scmp.lt.s32.totalorder %s21, 2
    // Predicated region
    $region61: #{tpu_custom_call.1} parent=5 // pred_check
      %p403 = pneg %p402
    $region62: #{tpu_custom_call.1} parent=5 // pred_check_branch
      %405 = sbr.rel (%p403) target = $region64
    $region63: #{tpu_custom_call.1} parent=5 // pred_region
      // Predicated region
      $region65: #{tpu_custom_call.1} parent=63 // pred_check
        %p406 = pneg %p41
      $region66: #{tpu_custom_call.1} parent=63 // pred_check_branch
        %408 = sbr.rel (%p406) target = $region68
      $region67: #{tpu_custom_call.1} parent=63 // pred_region
        %s409 = smul.u32 16, %s21
        %p410 = scmp.lt.s32.totalorder %s409, 31
        %s411 = scalar_select %p410, %s409, 31
        %s412 = smul.addr %s411, 8
        %s413 = scalar_lea.vmem %s0, %s412
        %s414 = smul.u32 16, %s21
      $region68: #{tpu_custom_call.1} parent=63 // pred_fallthru
        _
    $region64: #{tpu_custom_call.1} parent=5 // pred_fallthru
      _
    %p415 = scmp.le.s32.totalorder 1, %s21
    %p416 = scmp.lt.s32.totalorder %s21, 3
    %p417 = pnand %p415, %p416
    %p418 = pneg %p417
    // Predicated region
    $region69: #{tpu_custom_call.1} parent=5 // pred_check
      _
    $region70: #{tpu_custom_call.1} parent=5 // pred_check_branch
      %420 = sbr.rel (%p417) target = $region72
    $region71: #{tpu_custom_call.1} parent=5 // pred_region
      %s421 = ssub.s32 %s21, 1
      %s422 = smul.u32 16, %s26
      %p423 = scmp.lt.s32.totalorder %s422, 31
      %s424 = scalar_select %p423, %s422, 31
      %s425 = smul.addr %s424, 8
      %s426 = scalar_lea.vmem %s0, %s425
      %p427 = pneg %p47
      %p428 = pneg %p44
      %p429 = pneg %p68
      %p430 = pneg %p65
      %p431 = pneg %p89
      %p432 = pneg %p86
      %p433 = pneg %p110
      %p434 = pneg %p107
      %p435 = pneg %p131
      %p436 = pneg %p128
      %p437 = pneg %p152
      %p438 = pneg %p149
      %p439 = pneg %p173
      %p440 = pneg %p170
      %p441 = pneg %p194
      %p442 = pneg %p191
      %p443 = pneg %p215
      %p444 = pneg %p212
      %p445 = pneg %p236
      %p446 = pneg %p233
      %p447 = pneg %p257
      %p448 = pneg %p254
      %p449 = pneg %p278
      %p450 = pneg %p275
      %p451 = pneg %p299
      %p452 = pneg %p296
      %p453 = pneg %p325
      %p454 = pneg %p322
      %s455 = smul.u32 16, %s26
      %p456 = scmp.lt.s32.totalorder %s455, 31
      %s457 = scalar_select %p456, %s455, 31
      %s458 = smul.addr %s457, 8
      %s459 = scalar_lea.vmem %s13, %s458
      %p460 = pneg %p351
      %p461 = pneg %p348
      %s462 = smul.u32 16, %s26
      %p463 = scmp.lt.s32.totalorder %s462, 31
      %s464 = scalar_select %p463, %s462, 31
      %s465 = smul.addr %s464, 8
      %s466 = scalar_lea.vmem %s14, %s465
      %s467 = smul.u32 16, %s26
      %p468 = scmp.lt.s32.totalorder %s467, 31
      %s469 = scalar_select %p468, %s467, 31
      %s470 = smul.addr %s469, 8
      %s471 = scalar_lea.vmem %s0, %s470
      %s472 = smul.u32 16, %s26
      %s473 = smul.u32 16, %s26
      %p474 = scmp.lt.s32.totalorder %s473, 31
      %s475 = scalar_select %p474, %s473, 31
      %s476 = smul.addr %s475, 8
      %s477 = scalar_lea.vmem %s13, %s476
      %s478 = smul.u32 16, %s26
      %s479 = smul.u32 16, %s26
      %p480 = scmp.lt.s32.totalorder %s479, 31
      %s481 = scalar_select %p480, %s479, 31
      %s482 = smul.addr %s481, 8
      %s483 = scalar_lea.vmem %s14, %s482
      %s484 = smul.u32 16, %s26
      %v486 = vld [vmem:[%s471] sm:$0xff]
      %v487 = vld [vmem:[%s471 + $0x8] sm:$0xff]
      %v488 = vld [vmem:[%s471 + $0x10] sm:$0xff]
      %v489 = vld [vmem:[%s471 + $0x18] sm:$0xff]
      %v490 = vld [vmem:[%s471 + $0x20] sm:$0xff]
      %v491 = vld [vmem:[%s471 + $0x28] sm:$0xff]
      %v492 = vld [vmem:[%s471 + $0x30] sm:$0xff]
      %v493 = vld [vmem:[%s471 + $0x38] sm:$0xff]
      %v494 = vld [vmem:[%s471 + $0x40] sm:$0xff]
      %v495 = vld [vmem:[%s471 + $0x48] sm:$0xff]
      %v496 = vld [vmem:[%s471 + $0x50] sm:$0xff]
      %v497 = vld [vmem:[%s471 + $0x58] sm:$0xff]
      %v498 = vld [vmem:[%s471 + $0x60] sm:$0xff]
      %v499 = vld [vmem:[%s471 + $0x68] sm:$0xff]
      %v500 = vld [vmem:[%s471 + $0x70] sm:$0xff]
      %v501 = vld [vmem:[%s471 + $0x78] sm:$0xff]
      %502 = vxpose.xlu0.b32.start [1/16] %v486, 128
      %503 = vxpose.xlu0.b32.cont [2/16] %v487, 128
      %504 = vxpose.xlu0.b32.cont [3/16] %v488, 128
      %505 = vxpose.xlu0.b32.cont [4/16] %v489, 128
      %506 = vxpose.xlu0.b32.cont [5/16] %v490, 128
      %507 = vxpose.xlu0.b32.cont [6/16] %v491, 128
      %508 = vxpose.xlu0.b32.cont [7/16] %v492, 128
      %509 = vxpose.xlu0.b32.cont [8/16] %v493, 128
      %510 = vxpose.xlu0.b32.cont [9/16] %v494, 128
      %511 = vxpose.xlu0.b32.cont [10/16] %v495, 128
      %512 = vxpose.xlu0.b32.cont [11/16] %v496, 128
      %513 = vxpose.xlu0.b32.cont [12/16] %v497, 128
      %514 = vxpose.xlu0.b32.cont [13/16] %v498, 128
      %515 = vxpose.xlu0.b32.cont [14/16] %v499, 128
      %516 = vxpose.xlu0.b32.cont [15/16] %v500, 128
      %517 = vxpose.xlu0.b32.end [16/16] %v501, 128
      %v518 = vpop.trf.xlu0
      %v519 = vpop.trf.xlu0
      %v520 = vpop.trf.xlu0
      %v521 = vpop.trf.xlu0
      %v522 = vpop.trf.xlu0
      %v523 = vpop.trf.xlu0
      %v524 = vpop.trf.xlu0
      %v525 = vpop.trf.xlu0
      %v526 = vpop.trf.xlu0
      %v527 = vpop.trf.xlu0
      %v528 = vpop.trf.xlu0
      %v529 = vpop.trf.xlu0
      %v530 = vpop.trf.xlu0
      %v531 = vpop.trf.xlu0
      %v532 = vpop.trf.xlu0
      %v533 = vpop.trf.xlu0
      %v534 = vld [vmem:[%s1] sm:$0xf]
      %v535 = vld [vmem:[%s1 + $0x4] sm:$0xf]
      %v536 = vld [vmem:[%s1 + $0x8] sm:$0xf]
      %v537 = vld [vmem:[%s1 + $0xc] sm:$0xf]
      %v538 = vld [vmem:[%s1 + $0x10] sm:$0xf]
      %v539 = vld [vmem:[%s1 + $0x14] sm:$0xf]
      %v540 = vld [vmem:[%s1 + $0x18] sm:$0xf]
      %v541 = vld [vmem:[%s1 + $0x1c] sm:$0xf]
      %v542 = vpack.c.bf16 %v519, %v518
      %v543 = vld [vmem:[%s2] sm:$0xff]
      %v544 = vld [vmem:[%s2 + $0x8] sm:$0xff]
      %v545 = vld [vmem:[%s2 + $0x10] sm:$0xff]
      %v546 = vld [vmem:[%s2 + $0x18] sm:$0xff]
      %v547 = vld [vmem:[%s2 + $0x20] sm:$0xff]
      %v548 = vld [vmem:[%s2 + $0x28] sm:$0xff]
      %v549 = vld [vmem:[%s2 + $0x30] sm:$0xff]
      %v550 = vld [vmem:[%s2 + $0x38] sm:$0xff]
      %552 = vset.pattern.permute.xlu0 0
      %553 = vperm.xlu0 %552, %v543
      %v554 = vpop.permute.xlu0 %553
      %557 = vset.pattern.permute.xlu0 0
      %558 = vperm.xlu0 %557, %v544
      %v559 = vpop.permute.xlu0 %558
      %562 = vset.pattern.permute.xlu0 0
      %563 = vperm.xlu0 %562, %v545
      %v564 = vpop.permute.xlu0 %563
      %567 = vset.pattern.permute.xlu0 0
      %568 = vperm.xlu0 %567, %v546
      %v569 = vpop.permute.xlu0 %568
      %572 = vset.pattern.permute.xlu0 0
      %573 = vperm.xlu0 %572, %v547
      %v574 = vpop.permute.xlu0 %573
      %577 = vset.pattern.permute.xlu0 0
      %578 = vperm.xlu0 %577, %v548
      %v579 = vpop.permute.xlu0 %578
      %582 = vset.pattern.permute.xlu0 0
      %583 = vperm.xlu0 %582, %v549
      %v584 = vpop.permute.xlu0 %583
      %587 = vset.pattern.permute.xlu0 0
      %588 = vperm.xlu0 %587, %v550
      %v589 = vpop.permute.xlu0 %588
      %v599 = vunpack.c.l.b16 %v534
      %v600 = vunpack.c.l.b16 %v535
      %v601 = vunpack.c.l.b16 %v536
      %v602 = vunpack.c.l.b16 %v537
      %v603 = vunpack.c.l.b16 %v538
      %v604 = vunpack.c.l.b16 %v539
      %v605 = vunpack.c.l.b16 %v540
      %v606 = vunpack.c.l.b16 %v541
      %v607 = vpack.c.b16 %v600, %v599
      %v608 = vpack.c.b16 %v602, %v601
      %v609 = vpack.c.b16 %v604, %v603
      %v610 = vpack.c.b16 %v606, %v605
      %vm611 = vcmask 130048
      %v613 = vsel %vm611, %v607, 0
      %v616 = vsel %vm611, %v608, 0
      %v619 = vsel %vm611, %v609, 0
      %v622 = vsel %vm611, %v610, 0
      %624 = vmatprep.subr.bf16.mxu0 0
      %625 = vmatpush1.bf16.msra.mxu0 0
      %626 = vmatprep.subr.bf16.mxu0 0
      %627 = vmatpush1.bf16.msra.mxu0 0
      %628 = vmatprep.subr.bf16.mxu0 0
      %629 = vmatpush1.bf16.msra.mxu0 0
      %630 = vmatprep.subr.bf16.mxu0 0
      %631 = vmatpush1.bf16.msra.mxu0 0
      %632 = vmatprep.subr.bf16.mxu0 0
      %633 = vmatpush1.bf16.msra.mxu0 0
      %634 = vmatprep.subr.bf16.mxu0 0
      %635 = vmatpush1.bf16.msra.mxu0 0
      %636 = vmatprep.subr.bf16.mxu0 0
      %637 = vmatpush1.bf16.msra.mxu0 0
      %638 = vmatprep.subr.bf16.mxu0 0
      %639 = vmatpush1.bf16.msra.mxu0 %v542
      %640 = vmatprep.subr.bf16.mxu0 0
      %641 = vmatpush2.bf16.msra.mxu0 0
      %642 = vmatprep.subr.bf16.mxu0 0
      %643 = vmatpush2.bf16.msra.mxu0 0
      %644 = vmatprep.subr.bf16.mxu0 0
      %645 = vmatpush2.bf16.msra.mxu0 0
      %646 = vmatprep.subr.bf16.mxu0 0
      %647 = vmatpush2.bf16.msra.mxu0 0
      %648 = vmatprep.subr.bf16.mxu0 0
      %649 = vmatpush2.bf16.msra.mxu0 0
      %650 = vmatprep.subr.bf16.mxu0 0
      %651 = vmatpush2.bf16.msra.mxu0 0
      %652 = vmatprep.subr.bf16.mxu0 0
      %653 = vmatpush2.bf16.msra.mxu0 0
      %654 = vmatprep.subr.bf16.mxu0 0
      %655 = vmatpush2.bf16.msra.mxu0 0
      %656 = vmatprep.mubr.bf16.mxu0 0
      %657 = vmatmul.mubr.bf16.gmra.mxu0 %v613
      %v658 = vpop.f32.mrf.mxu0
      %v659 = vadd.f32 %v554, %v658
      %v660 = vpop.f32.mrf.mxu0
      %v661 = vpop.f32.mrf.mxu0
      %v662 = vadd.f32 %v559, %v661
      %v663 = vpop.f32.mrf.mxu0
      %664 = vmatprep.mubr.bf16.mxu0 0
      %665 = vmatmul.mubr.bf16.gmra.mxu0 %v616
      %v666 = vpop.f32.mrf.mxu0
      %v667 = vadd.f32 %v564, %v666
      %v668 = vpop.f32.mrf.mxu0
      %v669 = vpop.f32.mrf.mxu0
      %v670 = vadd.f32 %v569, %v669
      %v671 = vpop.f32.mrf.mxu0
      %672 = vmatprep.mubr.bf16.mxu0 0
      %673 = vmatmul.mubr.bf16.gmra.mxu0 %v619
      %v674 = vpop.f32.mrf.mxu0
      %v675 = vadd.f32 %v574, %v674
      %v676 = vpop.f32.mrf.mxu0
      %v677 = vpop.f32.mrf.mxu0
      %v678 = vadd.f32 %v579, %v677
      %v679 = vpop.f32.mrf.mxu0
      %680 = vmatprep.mubr.bf16.mxu0 0
      %681 = vmatmul.mubr.bf16.gmra.mxu0 %v622
      %v682 = vpop.f32.mrf.mxu0
      %v683 = vadd.f32 %v584, %v682
      %v684 = vpop.f32.mrf.mxu0
      %v685 = vpop.f32.mrf.mxu0
      %v686 = vadd.f32 %v589, %v685
      %v687 = vpop.f32.mrf.mxu0
      %688 = vdwg.mxu0
      %v689 = vmax.f32 %v659, 0.0
      %v690 = vmax.f32 %v662, 0.0
      %v691 = vmax.f32 %v667, 0.0
      %v692 = vmax.f32 %v670, 0.0
      %v693 = vmax.f32 %v675, 0.0
      %v694 = vmax.f32 %v678, 0.0
      %v695 = vmax.f32 %v683, 0.0
      %v696 = vmax.f32 %v686, 0.0
      %v697 = vld [vmem:[%s3] sm:$0xf]
      %v698 = vld [vmem:[%s3 + $0x4] sm:$0xf]
      %v699 = vld [vmem:[%s3 + $0x8] sm:$0xf]
      %v700 = vld [vmem:[%s3 + $0xc] sm:$0xf]
      %v701 = vpack.c.bf16 %v690, %v689
      %v702 = vpack.c.bf16 %v692, %v691
      %v703 = vpack.c.bf16 %v694, %v693
      %v704 = vpack.c.bf16 %v696, %v695
      %v705 = vld [vmem:[%s4] sm:$0xff]
      %v706 = vld [vmem:[%s4 + $0x8] sm:$0xff]
      %v707 = vld [vmem:[%s4 + $0x10] sm:$0xff]
      %v708 = vld [vmem:[%s4 + $0x18] sm:$0xff]
      %710 = vset.pattern.permute.xlu0 0
      %711 = vperm.xlu0 %710, %v705
      %v712 = vpop.permute.xlu0 %711
      %715 = vset.pattern.permute.xlu0 0
      %716 = vperm.xlu0 %715, %v706
      %v717 = vpop.permute.xlu0 %716
      %720 = vset.pattern.permute.xlu0 0
      %721 = vperm.xlu0 %720, %v707
      %v722 = vpop.permute.xlu0 %721
      %725 = vset.pattern.permute.xlu0 0
      %726 = vperm.xlu0 %725, %v708
      %v727 = vpop.permute.xlu0 %726
      %v733 = vunpack.c.l.b16 %v697
      %v734 = vunpack.c.l.b16 %v698
      %v735 = vunpack.c.l.b16 %v699
      %v736 = vunpack.c.l.b16 %v700
      %v737 = vpack.c.b16 %v734, %v733
      %v738 = vpack.c.b16 %v736, %v735
      %vm739 = vcmask 523264
      %v741 = vsel %vm739, %v737, 0
      %v744 = vsel %vm739, %v738, 0
      %746 = vmatprep.subr.bf16.mxu0 0
      %747 = vmatpush1.bf16.msra.mxu0 0
      %748 = vmatprep.subr.bf16.mxu0 0
      %749 = vmatpush1.bf16.msra.mxu0 0
      %750 = vmatprep.subr.bf16.mxu0 0
      %751 = vmatpush1.bf16.msra.mxu0 0
      %752 = vmatprep.subr.bf16.mxu0 0
      %753 = vmatpush1.bf16.msra.mxu0 0
      %754 = vmatprep.subr.bf16.mxu0 0
      %755 = vmatpush1.bf16.msra.mxu0 %v704
      %756 = vmatprep.subr.bf16.mxu0 0
      %757 = vmatpush1.bf16.msra.mxu0 %v703
      %758 = vmatprep.subr.bf16.mxu0 0
      %759 = vmatpush1.bf16.msra.mxu0 %v702
      %760 = vmatprep.subr.bf16.mxu0 0
      %761 = vmatpush1.bf16.msra.mxu0 %v701
      %762 = vmatprep.subr.bf16.mxu0 0
      %763 = vmatpush2.bf16.msra.mxu0 0
      %764 = vmatprep.subr.bf16.mxu0 0
      %765 = vmatpush2.bf16.msra.mxu0 0
      %766 = vmatprep.subr.bf16.mxu0 0
      %767 = vmatpush2.bf16.msra.mxu0 0
      %768 = vmatprep.subr.bf16.mxu0 0
      %769 = vmatpush2.bf16.msra.mxu0 0
      %770 = vmatprep.subr.bf16.mxu0 0
      %771 = vmatpush2.bf16.msra.mxu0 0
      %772 = vmatprep.subr.bf16.mxu0 0
      %773 = vmatpush2.bf16.msra.mxu0 0
      %774 = vmatprep.subr.bf16.mxu0 0
      %775 = vmatpush2.bf16.msra.mxu0 0
      %776 = vmatprep.subr.bf16.mxu0 0
      %777 = vmatpush2.bf16.msra.mxu0 0
      %778 = vmatprep.mubr.bf16.mxu0 0
      %779 = vmatmul.mubr.bf16.gmra.mxu0 %v741
      %v780 = vpop.f32.mrf.mxu0
      %v781 = vadd.f32 %v712, %v780
      %v782 = vpop.f32.mrf.mxu0
      %v783 = vpop.f32.mrf.mxu0
      %v784 = vadd.f32 %v717, %v783
      %v785 = vpop.f32.mrf.mxu0
      %786 = vmatprep.mubr.bf16.mxu0 0
      %787 = vmatmul.mubr.bf16.gmra.mxu0 %v744
      %v788 = vpop.f32.mrf.mxu0
      %v789 = vadd.f32 %v722, %v788
      %v790 = vpop.f32.mrf.mxu0
      %v791 = vpop.f32.mrf.mxu0
      %v792 = vadd.f32 %v727, %v791
      %v793 = vpop.f32.mrf.mxu0
      %794 = vdwg.mxu0
      %v795 = vmax.f32 %v781, 0.0
      %v796 = vmax.f32 %v784, 0.0
      %v797 = vmax.f32 %v789, 0.0
      %v798 = vmax.f32 %v792, 0.0
      %v799 = vld [vmem:[%s5] sm:$0xf]
      %v800 = vpack.c.bf16 %v796, %v795
      %v801 = vpack.c.bf16 %v798, %v797
      %v802 = vld [vmem:[%s6] sm:$0xff]
      %804 = vset.pattern.permute.xlu0 0
      %805 = vperm.xlu0 %804, %v802
      %v806 = vpop.permute.xlu0 %805
      %vm808 = vcmask 261120
      %v810 = vsel %vm808, %v799, 0
      %812 = vmatprep.subr.bf16.mxu0 0
      %813 = vmatpush1.bf16.msra.mxu0 0
      %814 = vmatprep.subr.bf16.mxu0 0
      %815 = vmatpush1.bf16.msra.mxu0 0
      %816 = vmatprep.subr.bf16.mxu0 0
      %817 = vmatpush1.bf16.msra.mxu0 0
      %818 = vmatprep.subr.bf16.mxu0 0
      %819 = vmatpush1.bf16.msra.mxu0 0
      %820 = vmatprep.subr.bf16.mxu0 0
      %821 = vmatpush1.bf16.msra.mxu0 0
      %822 = vmatprep.subr.bf16.mxu0 0
      %823 = vmatpush1.bf16.msra.mxu0 0
      %824 = vmatprep.subr.bf16.mxu0 0
      %825 = vmatpush1.bf16.msra.mxu0 %v801
      %826 = vmatprep.subr.bf16.mxu0 0
      %827 = vmatpush1.bf16.msra.mxu0 %v800
      %828 = vmatprep.subr.bf16.mxu0 0
      %829 = vmatpush2.bf16.msra.mxu0 0
      %830 = vmatprep.subr.bf16.mxu0 0
      %831 = vmatpush2.bf16.msra.mxu0 0
      %832 = vmatprep.subr.bf16.mxu0 0
      %833 = vmatpush2.bf16.msra.mxu0 0
      %834 = vmatprep.subr.bf16.mxu0 0
      %835 = vmatpush2.bf16.msra.mxu0 0
      %836 = vmatprep.subr.bf16.mxu0 0
      %837 = vmatpush2.bf16.msra.mxu0 0
      %838 = vmatprep.subr.bf16.mxu0 0
      %839 = vmatpush2.bf16.msra.mxu0 0
      %840 = vmatprep.subr.bf16.mxu0 0
      %841 = vmatpush2.bf16.msra.mxu0 0
      %842 = vmatprep.subr.bf16.mxu0 0
      %843 = vmatpush2.bf16.msra.mxu0 0
      %844 = vmatprep.mubr.bf16.mxu0 0
      %845 = vmatmul.mubr.bf16.gmra.mxu0 %v810
      %v846 = vpop.f32.mrf.mxu0
      %v847 = vadd.f32 %v806, %v846
      %v848 = vpop.f32.mrf.mxu0
      %v849 = vpop.f32.mrf.mxu0
      %v850 = vpop.f32.mrf.mxu0
      %851 = vdwg.mxu0
      %852 = vxpose.xlu0.b32.start [1/16] %v847, 128
      %853 = vxpose.xlu0.b32.cont [2/16] 0.0, 128
      %854 = vxpose.xlu0.b32.cont [3/16] 0.0, 128
      %855 = vxpose.xlu0.b32.cont [4/16] 0.0, 128
      %856 = vxpose.xlu0.b32.cont [5/16] 0.0, 128
      %857 = vxpose.xlu0.b32.cont [6/16] 0.0, 128
      %858 = vxpose.xlu0.b32.cont [7/16] 0.0, 128
      %859 = vxpose.xlu0.b32.cont [8/16] 0.0, 128
      %860 = vxpose.xlu0.b32.cont [9/16] 0.0, 128
      %861 = vxpose.xlu0.b32.cont [10/16] 0.0, 128
      %862 = vxpose.xlu0.b32.cont [11/16] 0.0, 128
      %863 = vxpose.xlu0.b32.cont [12/16] 0.0, 128
      %864 = vxpose.xlu0.b32.cont [13/16] 0.0, 128
      %865 = vxpose.xlu0.b32.cont [14/16] 0.0, 128
      %866 = vxpose.xlu0.b32.cont [15/16] 0.0, 128
      %867 = vxpose.xlu0.b32.end [16/16] 0.0, 128
      %v868 = vpop.trf.xlu0
      %v869 = vpop.trf.xlu0
      %v870 = vpop.trf.xlu0
      %v871 = vpop.trf.xlu0
      %v872 = vpop.trf.xlu0
      %v873 = vpop.trf.xlu0
      %v874 = vpop.trf.xlu0
      %v875 = vpop.trf.xlu0
      %v876 = vpop.trf.xlu0
      %v877 = vpop.trf.xlu0
      %v878 = vpop.trf.xlu0
      %v879 = vpop.trf.xlu0
      %v880 = vpop.trf.xlu0
      %v881 = vpop.trf.xlu0
      %v882 = vpop.trf.xlu0
      %v883 = vpop.trf.xlu0
      %vm884 = vcmask 64512
      %885 = vst.msk [vmem:[%s483] sm:$0xff] %vm884, %v868
      %886 = vst.msk [vmem:[%s483 + $0x8] sm:$0xff] %vm884, %v869
      %887 = vst.msk [vmem:[%s483 + $0x10] sm:$0xff] %vm884, %v870
      %888 = vst.msk [vmem:[%s483 + $0x18] sm:$0xff] %vm884, %v871
      %889 = vst.msk [vmem:[%s483 + $0x20] sm:$0xff] %vm884, %v872
      %890 = vst.msk [vmem:[%s483 + $0x28] sm:$0xff] %vm884, %v873
      %891 = vst.msk [vmem:[%s483 + $0x30] sm:$0xff] %vm884, %v874
      %892 = vst.msk [vmem:[%s483 + $0x38] sm:$0xff] %vm884, %v875
      %893 = vst.msk [vmem:[%s483 + $0x40] sm:$0xff] %vm884, %v876
      %894 = vst.msk [vmem:[%s483 + $0x48] sm:$0xff] %vm884, %v877
      %895 = vst.msk [vmem:[%s483 + $0x50] sm:$0xff] %vm884, %v878
      %896 = vst.msk [vmem:[%s483 + $0x58] sm:$0xff] %vm884, %v879
      %897 = vst.msk [vmem:[%s483 + $0x60] sm:$0xff] %vm884, %v880
      %898 = vst.msk [vmem:[%s483 + $0x68] sm:$0xff] %vm884, %v881
      %899 = vst.msk [vmem:[%s483 + $0x70] sm:$0xff] %vm884, %v882
      %900 = vst.msk [vmem:[%s483 + $0x78] sm:$0xff] %vm884, %v883
      %v901 = vld [vmem:[%s7] sm:$0xf]
      %v902 = vld [vmem:[%s7 + $0x4] sm:$0xf]
      %v903 = vld [vmem:[%s7 + $0x8] sm:$0xf]
      %v904 = vld [vmem:[%s7 + $0xc] sm:$0xf]
      %v905 = vpack.c.bf16 %v847, %v847
      %v906 = vld [vmem:[%s8] sm:$0xff]
      %v907 = vld [vmem:[%s8 + $0x8] sm:$0xff]
      %v908 = vld [vmem:[%s8 + $0x10] sm:$0xff]
      %v909 = vld [vmem:[%s8 + $0x18] sm:$0xff]
      %911 = vset.pattern.permute.xlu0 0
      %912 = vperm.xlu0 %911, %v906
      %v913 = vpop.permute.xlu0 %912
      %916 = vset.pattern.permute.xlu0 0
      %917 = vperm.xlu0 %916, %v907
      %v918 = vpop.permute.xlu0 %917
      %921 = vset.pattern.permute.xlu0 0
      %922 = vperm.xlu0 %921, %v908
      %v923 = vpop.permute.xlu0 %922
      %926 = vset.pattern.permute.xlu0 0
      %927 = vperm.xlu0 %926, %v909
      %v928 = vpop.permute.xlu0 %927
      %v934 = vunpack.c.l.b16 %v901
      %v935 = vunpack.c.l.b16 %v902
      %v936 = vunpack.c.l.b16 %v903
      %v937 = vunpack.c.l.b16 %v904
      %v938 = vpack.c.b16 %v935, %v934
      %v939 = vpack.c.b16 %v937, %v936
      %v941 = vsel %vm884, %v938, 0
      %v944 = vsel %vm884, %v939, 0
      %vm946 = vcmask 1043456
      %v948 = vsel %vm946, %v905, 0
      %950 = vmatprep.subr.bf16.mxu0 0
      %951 = vmatpush1.bf16.msra.mxu0 0
      %952 = vmatprep.subr.bf16.mxu0 0
      %953 = vmatpush1.bf16.msra.mxu0 0
      %954 = vmatprep.subr.bf16.mxu0 0
      %955 = vmatpush1.bf16.msra.mxu0 0
      %956 = vmatprep.subr.bf16.mxu0 0
      %957 = vmatpush1.bf16.msra.mxu0 0
      %958 = vmatprep.subr.bf16.mxu0 0
      %959 = vmatpush1.bf16.msra.mxu0 0
      %960 = vmatprep.subr.bf16.mxu0 0
      %961 = vmatpush1.bf16.msra.mxu0 0
      %962 = vmatprep.subr.bf16.mxu0 0
      %963 = vmatpush1.bf16.msra.mxu0 0
      %964 = vmatprep.subr.bf16.mxu0 0
      %965 = vmatpush1.bf16.msra.mxu0 %v948
      %966 = vmatprep.subr.bf16.mxu0 0
      %967 = vmatpush2.bf16.msra.mxu0 0
      %968 = vmatprep.subr.bf16.mxu0 0
      %969 = vmatpush2.bf16.msra.mxu0 0
      %970 = vmatprep.subr.bf16.mxu0 0
      %971 = vmatpush2.bf16.msra.mxu0 0
      %972 = vmatprep.subr.bf16.mxu0 0
      %973 = vmatpush2.bf16.msra.mxu0 0
      %974 = vmatprep.subr.bf16.mxu0 0
      %975 = vmatpush2.bf16.msra.mxu0 0
      %976 = vmatprep.subr.bf16.mxu0 0
      %977 = vmatpush2.bf16.msra.mxu0 0
      %978 = vmatprep.subr.bf16.mxu0 0
      %979 = vmatpush2.bf16.msra.mxu0 0
      %980 = vmatprep.subr.bf16.mxu0 0
      %981 = vmatpush2.bf16.msra.mxu0 0
      %982 = vmatprep.mubr.bf16.mxu0 0
      %983 = vmatmul.mubr.bf16.gmra.mxu0 %v941
      %v984 = vpop.f32.mrf.mxu0
      %v985 = vadd.f32 %v913, %v984
      %v986 = vpop.f32.mrf.mxu0
      %v987 = vpop.f32.mrf.mxu0
      %v988 = vadd.f32 %v918, %v987
      %v989 = vpop.f32.mrf.mxu0
      %990 = vmatprep.mubr.bf16.mxu0 0
      %991 = vmatmul.mubr.bf16.gmra.mxu0 %v944
      %v992 = vpop.f32.mrf.mxu0
      %v993 = vadd.f32 %v923, %v992
      %v994 = vpop.f32.mrf.mxu0
      %v995 = vpop.f32.mrf.mxu0
      %v996 = vadd.f32 %v928, %v995
      %v997 = vpop.f32.mrf.mxu0
      %998 = vdwg.mxu0
      %v999 = vmax.f32 %v985, 0.0
      %v1000 = vmax.f32 %v988, 0.0
      %v1001 = vmax.f32 %v993, 0.0
      %v1002 = vmax.f32 %v996, 0.0
      %v1003 = vld [vmem:[%s9] sm:$0xf]
      %v1004 = vld [vmem:[%s9 + $0x4] sm:$0xf]
      %v1005 = vld [vmem:[%s9 + $0x8] sm:$0xf]
      %v1006 = vld [vmem:[%s9 + $0xc] sm:$0xf]
      %v1007 = vld [vmem:[%s9 + $0x10] sm:$0xf]
      %v1008 = vld [vmem:[%s9 + $0x14] sm:$0xf]
      %v1009 = vld [vmem:[%s9 + $0x18] sm:$0xf]
      %v1010 = vld [vmem:[%s9 + $0x1c] sm:$0xf]
      %v1011 = vpack.c.bf16 %v1000, %v999
      %v1012 = vpack.c.bf16 %v1002, %v1001
      %v1013 = vld [vmem:[%s10] sm:$0xff]
      %v1014 = vld [vmem:[%s10 + $0x8] sm:$0xff]
      %v1015 = vld [vmem:[%s10 + $0x10] sm:$0xff]
      %v1016 = vld [vmem:[%s10 + $0x18] sm:$0xff]
      %v1017 = vld [vmem:[%s10 + $0x20] sm:$0xff]
      %v1018 = vld [vmem:[%s10 + $0x28] sm:$0xff]
      %v1019 = vld [vmem:[%s10 + $0x30] sm:$0xff]
      %v1020 = vld [vmem:[%s10 + $0x38] sm:$0xff]
      %1022 = vset.pattern.permute.xlu0 0
      %1023 = vperm.xlu0 %1022, %v1013
      %v1024 = vpop.permute.xlu0 %1023
      %1027 = vset.pattern.permute.xlu0 0
      %1028 = vperm.xlu0 %1027, %v1014
      %v1029 = vpop.permute.xlu0 %1028
      %1032 = vset.pattern.permute.xlu0 0
      %1033 = vperm.xlu0 %1032, %v1015
      %v1034 = vpop.permute.xlu0 %1033
      %1037 = vset.pattern.permute.xlu0 0
      %1038 = vperm.xlu0 %1037, %v1016
      %v1039 = vpop.permute.xlu0 %1038
      %1042 = vset.pattern.permute.xlu0 0
      %1043 = vperm.xlu0 %1042, %v1017
      %v1044 = vpop.permute.xlu0 %1043
      %1047 = vset.pattern.permute.xlu0 0
      %1048 = vperm.xlu0 %1047, %v1018
      %v1049 = vpop.permute.xlu0 %1048
      %1052 = vset.pattern.permute.xlu0 0
      %1053 = vperm.xlu0 %1052, %v1019
      %v1054 = vpop.permute.xlu0 %1053
      %1057 = vset.pattern.permute.xlu0 0
      %1058 = vperm.xlu0 %1057, %v1020
      %v1059 = vpop.permute.xlu0 %1058
      %v1069 = vunpack.c.l.b16 %v1003
      %v1070 = vunpack.c.l.b16 %v1004
      %v1071 = vunpack.c.l.b16 %v1005
      %v1072 = vunpack.c.l.b16 %v1006
      %v1073 = vunpack.c.l.b16 %v1007
      %v1074 = vunpack.c.l.b16 %v1008
      %v1075 = vunpack.c.l.b16 %v1009
      %v1076 = vunpack.c.l.b16 %v1010
      %v1077 = vpack.c.b16 %v1070, %v1069
      %v1078 = vpack.c.b16 %v1072, %v1071
      %v1079 = vpack.c.b16 %v1074, %v1073
      %v1080 = vpack.c.b16 %v1076, %v1075
      %v1082 = vsel %vm808, %v1077, 0
      %v1085 = vsel %vm808, %v1078, 0
      %v1088 = vsel %vm808, %v1079, 0
      %v1091 = vsel %vm808, %v1080, 0
      %1093 = vmatprep.subr.bf16.mxu0 0
      %1094 = vmatpush1.bf16.msra.mxu0 0
      %1095 = vmatprep.subr.bf16.mxu0 0
      %1096 = vmatpush1.bf16.msra.mxu0 0
      %1097 = vmatprep.subr.bf16.mxu0 0
      %1098 = vmatpush1.bf16.msra.mxu0 0
      %1099 = vmatprep.subr.bf16.mxu0 0
      %1100 = vmatpush1.bf16.msra.mxu0 0
      %1101 = vmatprep.subr.bf16.mxu0 0
      %1102 = vmatpush1.bf16.msra.mxu0 0
      %1103 = vmatprep.subr.bf16.mxu0 0
      %1104 = vmatpush1.bf16.msra.mxu0 0
      %1105 = vmatprep.subr.bf16.mxu0 0
      %1106 = vmatpush1.bf16.msra.mxu0 %v1012
      %1107 = vmatprep.subr.bf16.mxu0 0
      %1108 = vmatpush1.bf16.msra.mxu0 %v1011
      %1109 = vmatprep.subr.bf16.mxu0 0
      %1110 = vmatpush2.bf16.msra.mxu0 0
      %1111 = vmatprep.subr.bf16.mxu0 0
      %1112 = vmatpush2.bf16.msra.mxu0 0
      %1113 = vmatprep.subr.bf16.mxu0 0
      %1114 = vmatpush2.bf16.msra.mxu0 0
      %1115 = vmatprep.subr.bf16.mxu0 0
      %1116 = vmatpush2.bf16.msra.mxu0 0
      %1117 = vmatprep.subr.bf16.mxu0 0
      %1118 = vmatpush2.bf16.msra.mxu0 0
      %1119 = vmatprep.subr.bf16.mxu0 0
      %1120 = vmatpush2.bf16.msra.mxu0 0
      %1121 = vmatprep.subr.bf16.mxu0 0
      %1122 = vmatpush2.bf16.msra.mxu0 0
      %1123 = vmatprep.subr.bf16.mxu0 0
      %1124 = vmatpush2.bf16.msra.mxu0 0
      %1125 = vmatprep.mubr.bf16.mxu0 0
      %1126 = vmatmul.mubr.bf16.gmra.mxu0 %v1082
      %v1127 = vpop.f32.mrf.mxu0
      %v1128 = vadd.f32 %v1024, %v1127
      %v1129 = vpop.f32.mrf.mxu0
      %v1130 = vpop.f32.mrf.mxu0
      %v1131 = vadd.f32 %v1029, %v1130
      %v1132 = vpop.f32.mrf.mxu0
      %1133 = vmatprep.mubr.bf16.mxu0 0
      %1134 = vmatmul.mubr.bf16.gmra.mxu0 %v1085
      %v1135 = vpop.f32.mrf.mxu0
      %v1136 = vadd.f32 %v1034, %v1135
      %v1137 = vpop.f32.mrf.mxu0
      %v1138 = vpop.f32.mrf.mxu0
      %v1139 = vadd.f32 %v1039, %v1138
      %v1140 = vpop.f32.mrf.mxu0
      %1141 = vmatprep.mubr.bf16.mxu0 0
      %1142 = vmatmul.mubr.bf16.gmra.mxu0 %v1088
      %v1143 = vpop.f32.mrf.mxu0
      %v1144 = vadd.f32 %v1044, %v1143
      %v1145 = vpop.f32.mrf.mxu0
      %v1146 = vpop.f32.mrf.mxu0
      %v1147 = vadd.f32 %v1049, %v1146
      %v1148 = vpop.f32.mrf.mxu0
      %1149 = vmatprep.mubr.bf16.mxu0 0
      %1150 = vmatmul.mubr.bf16.gmra.mxu0 %v1091
      %v1151 = vpop.f32.mrf.mxu0
      %v1152 = vadd.f32 %v1054, %v1151
      %v1153 = vpop.f32.mrf.mxu0
      %v1154 = vpop.f32.mrf.mxu0
      %v1155 = vadd.f32 %v1059, %v1154
      %v1156 = vpop.f32.mrf.mxu0
      %1157 = vdwg.mxu0
      %v1158 = vmax.f32 %v1128, 0.0
      %v1159 = vmax.f32 %v1131, 0.0
      %v1160 = vmax.f32 %v1136, 0.0
      %v1161 = vmax.f32 %v1139, 0.0
      %v1162 = vmax.f32 %v1144, 0.0
      %v1163 = vmax.f32 %v1147, 0.0
      %v1164 = vmax.f32 %v1152, 0.0
      %v1165 = vmax.f32 %v1155, 0.0
      %v1166 = vld [vmem:[%s11] sm:$0xf]
      %v1167 = vld [vmem:[%s11 + $0x4] sm:$0xf]
      %v1168 = vpack.c.bf16 %v1159, %v1158
      %v1169 = vpack.c.bf16 %v1161, %v1160
      %v1170 = vpack.c.bf16 %v1163, %v1162
      %v1171 = vpack.c.bf16 %v1165, %v1164
      %v1172 = vld [vmem:[%s12] sm:$0xff]
      %v1173 = vld [vmem:[%s12 + $0x8] sm:$0xff]
      %1175 = vset.pattern.permute.xlu0 0
      %1176 = vperm.xlu0 %1175, %v1172
      %v1177 = vpop.permute.xlu0 %1176
      %1180 = vset.pattern.permute.xlu0 0
      %1181 = vperm.xlu0 %1180, %v1173
      %v1182 = vpop.permute.xlu0 %1181
      %v1186 = vunpack.c.l.b16 %v1166
      %v1187 = vunpack.c.l.b16 %v1167
      %v1188 = vpack.c.b16 %v1187, %v1186
      %v1190 = vsel %vm739, %v1188, 0
      %1192 = vmatprep.subr.bf16.mxu0 0
      %1193 = vmatpush1.bf16.msra.mxu0 0
      %1194 = vmatprep.subr.bf16.mxu0 0
      %1195 = vmatpush1.bf16.msra.mxu0 0
      %1196 = vmatprep.subr.bf16.mxu0 0
      %1197 = vmatpush1.bf16.msra.mxu0 0
      %1198 = vmatprep.subr.bf16.mxu0 0
      %1199 = vmatpush1.bf16.msra.mxu0 0
      %1200 = vmatprep.subr.bf16.mxu0 0
      %1201 = vmatpush1.bf16.msra.mxu0 %v1171
      %1202 = vmatprep.subr.bf16.mxu0 0
      %1203 = vmatpush1.bf16.msra.mxu0 %v1170
      %1204 = vmatprep.subr.bf16.mxu0 0
      %1205 = vmatpush1.bf16.msra.mxu0 %v1169
      %1206 = vmatprep.subr.bf16.mxu0 0
      %1207 = vmatpush1.bf16.msra.mxu0 %v1168
      %1208 = vmatprep.subr.bf16.mxu0 0
      %1209 = vmatpush2.bf16.msra.mxu0 0
      %1210 = vmatprep.subr.bf16.mxu0 0
      %1211 = vmatpush2.bf16.msra.mxu0 0
      %1212 = vmatprep.subr.bf16.mxu0 0
      %1213 = vmatpush2.bf16.msra.mxu0 0
      %1214 = vmatprep.subr.bf16.mxu0 0
      %1215 = vmatpush2.bf16.msra.mxu0 0
      %1216 = vmatprep.subr.bf16.mxu0 0
      %1217 = vmatpush2.bf16.msra.mxu0 0
      %1218 = vmatprep.subr.bf16.mxu0 0
      %1219 = vmatpush2.bf16.msra.mxu0 0
      %1220 = vmatprep.subr.bf16.mxu0 0
      %1221 = vmatpush2.bf16.msra.mxu0 0
      %1222 = vmatprep.subr.bf16.mxu0 0
      %1223 = vmatpush2.bf16.msra.mxu0 0
      %1224 = vmatprep.mubr.bf16.mxu0 0
      %1225 = vmatmul.mubr.bf16.gmra.mxu0 %v1190
      %v1226 = vpop.f32.mrf.mxu0
      %v1227 = vadd.f32 %v1177, %v1226
      %v1228 = vpop.f32.mrf.mxu0
      %v1229 = vpop.f32.mrf.mxu0
      %v1230 = vadd.f32 %v1182, %v1229
      %v1231 = vpop.f32.mrf.mxu0
      %1232 = vdwg.mxu0
      %1233 = vxpose.xlu0.b32.start [1/16] %v1227, 128
      %1234 = vxpose.xlu0.b32.cont [2/16] %v1230, 128
      %1235 = vxpose.xlu0.b32.cont [3/16] 0.0, 128
      %1236 = vxpose.xlu0.b32.cont [4/16] 0.0, 128
      %1237 = vxpose.xlu0.b32.cont [5/16] 0.0, 128
      %1238 = vxpose.xlu0.b32.cont [6/16] 0.0, 128
      %1239 = vxpose.xlu0.b32.cont [7/16] 0.0, 128
      %1240 = vxpose.xlu0.b32.cont [8/16] 0.0, 128
      %1241 = vxpose.xlu0.b32.cont [9/16] 0.0, 128
      %1242 = vxpose.xlu0.b32.cont [10/16] 0.0, 128
      %1243 = vxpose.xlu0.b32.cont [11/16] 0.0, 128
      %1244 = vxpose.xlu0.b32.cont [12/16] 0.0, 128
      %1245 = vxpose.xlu0.b32.cont [13/16] 0.0, 128
      %1246 = vxpose.xlu0.b32.cont [14/16] 0.0, 128
      %1247 = vxpose.xlu0.b32.cont [15/16] 0.0, 128
      %1248 = vxpose.xlu0.b32.end [16/16] 0.0, 128
      %v1249 = vpop.trf.xlu0
      %v1250 = vpop.trf.xlu0
      %v1251 = vpop.trf.xlu0
      %v1252 = vpop.trf.xlu0
      %v1253 = vpop.trf.xlu0
      %v1254 = vpop.trf.xlu0
      %v1255 = vpop.trf.xlu0
      %v1256 = vpop.trf.xlu0
      %v1257 = vpop.trf.xlu0
      %v1258 = vpop.trf.xlu0
      %v1259 = vpop.trf.xlu0
      %v1260 = vpop.trf.xlu0
      %v1261 = vpop.trf.xlu0
      %v1262 = vpop.trf.xlu0
      %v1263 = vpop.trf.xlu0
      %v1264 = vpop.trf.xlu0
      %1265 = vst.msk [vmem:[%s477] sm:$0xff] %vm611, %v1249
      %1266 = vst.msk [vmem:[%s477 + $0x8] sm:$0xff] %vm611, %v1250
      %1267 = vst.msk [vmem:[%s477 + $0x10] sm:$0xff] %vm611, %v1251
      %1268 = vst.msk [vmem:[%s477 + $0x18] sm:$0xff] %vm611, %v1252
      %1269 = vst.msk [vmem:[%s477 + $0x20] sm:$0xff] %vm611, %v1253
      %1270 = vst.msk [vmem:[%s477 + $0x28] sm:$0xff] %vm611, %v1254
      %1271 = vst.msk [vmem:[%s477 + $0x30] sm:$0xff] %vm611, %v1255
      %1272 = vst.msk [vmem:[%s477 + $0x38] sm:$0xff] %vm611, %v1256
      %1273 = vst.msk [vmem:[%s477 + $0x40] sm:$0xff] %vm611, %v1257
      %1274 = vst.msk [vmem:[%s477 + $0x48] sm:$0xff] %vm611, %v1258
      %1275 = vst.msk [vmem:[%s477 + $0x50] sm:$0xff] %vm611, %v1259
      %1276 = vst.msk [vmem:[%s477 + $0x58] sm:$0xff] %vm611, %v1260
      %1277 = vst.msk [vmem:[%s477 + $0x60] sm:$0xff] %vm611, %v1261
      %1278 = vst.msk [vmem:[%s477 + $0x68] sm:$0xff] %vm611, %v1262
      %1279 = vst.msk [vmem:[%s477 + $0x70] sm:$0xff] %vm611, %v1263
      %1280 = vst.msk [vmem:[%s477 + $0x78] sm:$0xff] %vm611, %v1264
      %s1281 = smul.u32 16, %s26
      %p1282 = scmp.lt.s32.totalorder %s1281, 31
      %s1283 = scalar_select %p1282, %s1281, 31
      %s1284 = smul.addr %s1283, 8
      %s1285 = scalar_lea.vmem %s13, %s1284
      %s1286 = smul.u32 16, %s26
      %p1287 = scmp.lt.s32.totalorder %s1286, 31
      %s1288 = scalar_select %p1287, %s1286, 31
      %s1289 = smul.addr %s1288, 8
      %s1290 = scalar_lea.vmem %s14, %s1289
      // Predicated region
      $region73: #{tpu_custom_call.1} parent=71 // pred_check
        %p1291 = pneg %p322
      $region74: #{tpu_custom_call.1} parent=71 // pred_check_branch
        %1293 = sbr.rel (%p1291) target = $region76
      $region75: #{tpu_custom_call.1} parent=71 // pred_region
        %s1294 = smul.u32 16, %s26
      $region76: #{tpu_custom_call.1} parent=71 // pred_fallthru
        _
      // Predicated region
      $region77: #{tpu_custom_call.1} parent=71 // pred_check
        %p1295 = pneg %p348
      $region78: #{tpu_custom_call.1} parent=71 // pred_check_branch
        %1297 = sbr.rel (%p1295) target = $region80
      $region79: #{tpu_custom_call.1} parent=71 // pred_region
        %s1298 = smul.u32 16, %s26
      $region80: #{tpu_custom_call.1} parent=71 // pred_fallthru
        _
    $region72: #{tpu_custom_call.1} parent=5 // pred_fallthru
      _
    %p1299 = scmp.le.s32.totalorder 2, %s21
    // Predicated region
    $region81: #{tpu_custom_call.1} parent=5 // pred_check
      %p1300 = pneg %p1299
    $region82: #{tpu_custom_call.1} parent=5 // pred_check_branch
      %1302 = sbr.rel (%p1300) target = $region84
    $region83: #{tpu_custom_call.1} parent=5 // pred_region
      %s1303 = ssub.s32 %s21, 2
      // Predicated region
      $region85: #{tpu_custom_call.1} parent=83 // pred_check
        %p1304 = pneg %p328
      $region86: #{tpu_custom_call.1} parent=83 // pred_check_branch
        %1306 = sbr.rel (%p1304) target = $region88
      $region87: #{tpu_custom_call.1} parent=83 // pred_region
        %s1307 = smul.u32 16, %s27
        %p1308 = scmp.lt.s32.totalorder %s1307, 31
        %s1309 = scalar_select %p1308, %s1307, 31
        %s1310 = smul.addr %s1309, 8
        %s1311 = scalar_lea.vmem %s13, %s1310
      $region88: #{tpu_custom_call.1} parent=83 // pred_fallthru
        _
      // Predicated region
      $region89: #{tpu_custom_call.1} parent=83 // pred_check
        %p1312 = pneg %p354
      $region90: #{tpu_custom_call.1} parent=83 // pred_check_branch
        %1314 = sbr.rel (%p1312) target = $region92
      $region91: #{tpu_custom_call.1} parent=83 // pred_region
        %s1315 = smul.u32 16, %s27
        %p1316 = scmp.lt.s32.totalorder %s1315, 31
        %s1317 = scalar_select %p1316, %s1315, 31
        %s1318 = smul.addr %s1317, 8
        %s1319 = scalar_lea.vmem %s14, %s1318
      $region92: #{tpu_custom_call.1} parent=83 // pred_fallthru
        _
    $region84: #{tpu_custom_call.1} parent=5 // pred_fallthru
      _
  $region6: #{tpu_custom_call.1} parent=0 // loop_footer
    %s25 = sadd.s32 1, %s21
  $region7: #{tpu_custom_call.1} parent=0 // loop_footer_branch
    %20 = sbr.rel target = $region3
  $region8: #{tpu_custom_call.1} parent=0 // loop_exit
    _

</llo_original>
